<compile_context>
chip_gen: v7x
topology: tpu7x:2x2x1
jax: 0.10.0
libtpu: 0.0.40
codegen_flags: <defaults>
</compile_context>

<pallas_src>
import functools

import jax
import jax.numpy as jnp
from jax import lax
from jax.experimental import pallas as pl
from jax.experimental.pallas import tpu as pltpu

LANE = 128
SUBLANE = 8


def _self_def_loss_kernel(diff_ref, out_ref, *, n_total, block_rows, n_inner,
                          has_padding):
    # diff_ref : VMEM f32[3, block_rows, 128]  rows: 0=d_roll, 1=d_pitch, 2=d_thrust
    # out_ref  : VMEM f32[1, 2, 8, 128]        per-outer-slice partial accumulators
    #            (channel 0: sum of rotation error, channel 1: sum of thrust^2)
    oi = pl.program_id(0)   # "parallel" axis (split across TCs on multi-core chips)
    ii = pl.program_id(1)   # "arbitrary" reduction axis (output block resident)

    @pl.when(ii == 0)
    def _init():
        out_ref[...] = jnp.zeros_like(out_ref)

    dr = diff_ref[0]        # (block_rows, 128)
    dp = diff_ref[1]
    dthr = diff_ref[2]

    # trace(R1^T R2) collapses to cos(dr) + cos(dp) + cos(dr)*cos(dp):
    #   cx1*cx2 + sx1*sx2 = cos(dr),  cy1*cy2 + sy1*sy2 = cos(dp)
    cdr = jnp.cos(dr)
    cdp = jnp.cos(dp)
    trace = cdr + cdp + cdr * cdp
    acos_arg = (trace - 1.0) * 0.5 * 0.99999
    # acos(x) = atan2(sqrt(1 - x^2), x)  -- Mosaic-friendly decomposition
    rot_err = jnp.arctan2(
        jnp.sqrt(jnp.maximum(1.0 - acos_arg * acos_arg, 0.0)), acos_arg)
    thr_sq = dthr * dthr

    groups = block_rows // SUBLANE

    def _accumulate(rot, thr):
        # Sublane-group partial sums: pure VALU adds into the resident
        # (8, 128) accumulators; the cross-lane reduce happens in the wrapper.
        rot_part = jnp.sum(rot.reshape(groups, SUBLANE, LANE), axis=0)
        thr_part = jnp.sum(thr.reshape(groups, SUBLANE, LANE), axis=0)
        out_ref[0, 0, :, :] = out_ref[0, 0, :, :] + rot_part
        out_ref[0, 1, :, :] = out_ref[0, 1, :, :] + thr_part

    if has_padding:
        block_elems = block_rows * LANE
        block_start = (oi * n_inner + ii) * block_elems
        is_tail = block_start + block_elems > n_total

        @pl.when(jnp.logical_not(is_tail))
        def _full_block():
            _accumulate(rot_err, thr_sq)

        @pl.when(is_tail)
        def _tail_block():
            # Only trailing blocks pay for the mask.
            row = lax.broadcasted_iota(jnp.int32, (block_rows, LANE), 0)
            lane = lax.broadcasted_iota(jnp.int32, (block_rows, LANE), 1)
            gidx = block_start + row * LANE + lane
            valid = gidx < n_total
            _accumulate(jnp.where(valid, rot_err, 0.0),
                        jnp.where(valid, thr_sq, 0.0))
    else:
        _accumulate(rot_err, thr_sq)


def _round_up(x, m):
    return (x + m - 1) // m * m


def _reference_loss(prediction, target, weight_vec):
    """Pure-JAX reference mirroring the PyTorch forward (full rotation-matrix form)."""
    net_roll, net_pitch, net_thr = prediction[:, 0], prediction[:, 1], prediction[:, 2]
    tar_roll, tar_pitch, tar_thr = target[:, 0], target[:, 1], target[:, 2]
    cx1, sx1 = jnp.cos(net_roll), jnp.sin(net_roll)
    cy1, sy1 = jnp.cos(net_pitch), jnp.sin(net_pitch)
    cx2, sx2 = jnp.cos(tar_roll), jnp.sin(tar_roll)
    cy2, sy2 = jnp.cos(tar_pitch), jnp.sin(tar_pitch)
    m00 = cy1 * cy2 + sy1 * sy2
    m11 = cx1 * cx2 + cy1 * cy2 * sx1 * sx2 + sx1 * sx2 * sy1 * sy2
    m22 = sx1 * sx2 + cx1 * cx2 * sy1 * sy2 + cx1 * cx2 * cy1 * cy2
    acos_arg = (m00 + m11 + m22 - 1.0) / 2.0 * 0.99999
    rot_err = jnp.arccos(acos_arg)
    thrust_err = net_thr - tar_thr
    err = rot_err * weight_vec[1] + thrust_err ** 2 * weight_vec[2]
    return err.mean()


def self_def_loss(prediction, target, weight_vec, *, block_rows=2048,
                  num_parallel=2, min_pallas_n=0):
    """prediction, target: [N, 3] float32 (roll, pitch, thrust); weight_vec: [3].

    min_pallas_n: batches smaller than this use the fused-XLA path (the kernel
    launch + relayout is overhead-dominated below ~1e5 elements). Default 0 so
    the Pallas kernel always runs.
    """
    prediction = jnp.asarray(prediction, jnp.float32)
    target = jnp.asarray(target, jnp.float32)
    weight_vec = jnp.asarray(weight_vec, jnp.float32)
    n = prediction.shape[0]

    if n < min_pallas_n:
        return _reference_loss(prediction, target, weight_vec)

    assert block_rows % SUBLANE == 0, "block_rows must be a multiple of 8"
    rows_needed = max(1, -(-n // LANE))                 # ceil(N / 128)
    br = min(block_rows, _round_up(rows_needed, SUBLANE))
    n_blocks = -(-rows_needed // br)
    n_outer = max(1, min(num_parallel, n_blocks))       # parallel slices (v7x: 2 TCs)
    n_inner = -(-n_blocks // n_outer)                   # reduction steps per slice
    total_rows = n_outer * n_inner * br
    padded_n = total_rows * LANE
    has_padding = padded_n != n

    # Single fused XLA pass: subtract + pad + channel-major, sublane-dense
    # relayout -> f32[3, total_rows, 128].  (Producers that already emit a
    # channel-major [3, N] delta can skip the transpose entirely.)
    diff = prediction - target
    if has_padding:
        diff = jnp.pad(diff, ((0, padded_n - n), (0, 0)))
    diff_b = diff.T.reshape(3, total_rows, LANE)

    kernel = functools.partial(
        _self_def_loss_kernel, n_total=n, block_rows=br, n_inner=n_inner,
        has_padding=has_padding)

    # Derive the VMEM budget from the tile: double-buffered input block plus
    # elementwise temporaries, capped so the same config fits v7x's 64 MiB.
    in_block_bytes = 3 * br * LANE * 4
    vmem_limit = int(min(max(2 * in_block_bytes + 8 * br * LANE * 4 + (1 << 20),
                             16 << 20), 48 << 20))

    partials = pl.pallas_call(
        kernel,
        out_shape=jax.ShapeDtypeStruct((n_outer, 2, SUBLANE, LANE), jnp.float32),
        grid=(n_outer, n_inner),
        in_specs=[
            pl.BlockSpec((3, br, LANE),
                         lambda oi, ii: (0, oi * n_inner + ii, 0)),
        ],
        out_specs=pl.BlockSpec((1, 2, SUBLANE, LANE),
                               lambda oi, ii: (oi, 0, 0, 0)),
        compiler_params=pltpu.CompilerParams(
            dimension_semantics=("parallel", "arbitrary"),
            vmem_limit_bytes=vmem_limit,
        ),
    )(diff_b)

    # Tiny cross-lane reduce + weighting + 1/N on the host/XLA side.
    rot_sum = jnp.sum(partials[:, 0])
    thr_sum = jnp.sum(partials[:, 1])
    return (rot_sum * weight_vec[1] + thr_sum * weight_vec[2]) / jnp.float32(n)


if __name__ == "__main__":
    key = jax.random.PRNGKey(0)
    k1, k2, k3, k4 = jax.random.split(key, 4)

    # deterministic synthetic weight_vec (module stores it in __init__)
    weight_vec = jnp.array([1.0, 0.5, 0.25], dtype=jnp.float32)

    # Small case: single (8, 128) block, tail-masked padding.
    N = 8
    prediction = jax.random.uniform(k1, (N, 3), jnp.float32, minval=-0.5, maxval=0.5)
    target = jax.random.uniform(k2, (N, 3), jnp.float32, minval=-0.5, maxval=0.5)
    loss = self_def_loss(prediction, target, weight_vec)
    jax.block_until_ready(loss)
    ref = _reference_loss(prediction, target, weight_vec)
    assert jnp.allclose(loss, ref, atol=1e-4, rtol=1e-4), (loss, ref)

    # Multi-block case: exercises the parallel outer axis (2 slices), the inner
    # reduction axis, the vreg accumulators and multi-block tail masking.
    N2 = 5000
    prediction2 = jax.random.uniform(k3, (N2, 3), jnp.float32, minval=-0.5, maxval=0.5)
    target2 = jax.random.uniform(k4, (N2, 3), jnp.float32, minval=-0.5, maxval=0.5)
    loss2 = self_def_loss(prediction2, target2, weight_vec, block_rows=8, num_parallel=2)
    jax.block_until_ready(loss2)
    ref2 = _reference_loss(prediction2, target2, weight_vec)
    assert jnp.allclose(loss2, ref2, atol=1e-4, rtol=1e-4), (loss2, ref2)

    # Small-N fused-XLA fast path agrees with the kernel.
    loss3 = self_def_loss(prediction2, target2, weight_vec, min_pallas_n=100_000)
    jax.block_until_ready(loss3)
    assert jnp.allclose(loss3, loss2, atol=1e-4, rtol=1e-4), (loss3, loss2)

    print("KERNEL_OK")
</pallas_src>

<mosaic_0001>
module attributes {stable_mosaic.version = 11 : i64} {
  func.func @_self_def_loss_kernel(%arg0: i32, %arg1: i32, %arg2: memref<3x8x128xf32, #tpu.memory_space<vmem>>, %arg3: memref<1x2x8x128xf32, #tpu.memory_space<vmem>>) attributes {dimension_semantics = [#tpu.dimension_semantics<parallel>, #tpu.dimension_semantics<arbitrary>], iteration_bounds = array<i64: 1, 1>, scalar_prefetch = 0 : i64, scratch_operands = 0 : i64, tpu.core_type = #tpu.core_type<tc>, window_params = [{transform_indices = @transform_0, window_bounds = array<i64: 3, 8, 128>}, {transform_indices = @transform_1, window_bounds = array<i64: 1, 2, 8, 128>}]} {
    %c0_i32 = arith.constant 0 : i32
    %0 = arith.cmpi eq, %arg1, %c0_i32 : i32
    %1 = arith.extui %0 : i1 to i32
    %c0_i32_0 = arith.constant 0 : i32
    %2 = arith.cmpi ne, %1, %c0_i32_0 : i32
    scf.if %2 {
      %cst_14 = arith.constant 0.000000e+00 : f32
      %38 = vector.broadcast %cst_14 : f32 to vector<1x2x8x128xf32>
      %c0_15 = arith.constant 0 : index
      %c0_16 = arith.constant 0 : index
      %c0_17 = arith.constant 0 : index
      %c0_18 = arith.constant 0 : index
      %39 = vector.load %arg3[%c0_15, %c0_16, %c0_17, %c0_18] : memref<1x2x8x128xf32, #tpu.memory_space<vmem>>, vector<1x2x8x128xf32>
      tpu.vector_store %arg3[%c0_15, %c0_16, %c0_17, %c0_18], %38 {strides = array<i32>} : memref<1x2x8x128xf32, #tpu.memory_space<vmem>>, vector<1x2x8x128xf32>,
    } else {
    }
    %c0 = arith.constant 0 : index
    %c0_1 = arith.constant 0 : index
    %c0_2 = arith.constant 0 : index
    %3 = vector.load %arg2[%c0, %c0_1, %c0_2] : memref<3x8x128xf32, #tpu.memory_space<vmem>>, vector<1x8x128xf32>
    %4 = vector.shape_cast %3 : vector<1x8x128xf32> to vector<8x128xf32>
    %c1 = arith.constant 1 : index
    %c0_3 = arith.constant 0 : index
    %c0_4 = arith.constant 0 : index
    %5 = vector.load %arg2[%c1, %c0_3, %c0_4] : memref<3x8x128xf32, #tpu.memory_space<vmem>>, vector<1x8x128xf32>
    %6 = vector.shape_cast %5 : vector<1x8x128xf32> to vector<8x128xf32>
    %c2 = arith.constant 2 : index
    %c0_5 = arith.constant 0 : index
    %c0_6 = arith.constant 0 : index
    %7 = vector.load %arg2[%c2, %c0_5, %c0_6] : memref<3x8x128xf32, #tpu.memory_space<vmem>>, vector<1x8x128xf32>
    %8 = vector.shape_cast %7 : vector<1x8x128xf32> to vector<8x128xf32>
    %9 = math.cos %4 : vector<8x128xf32>
    %10 = math.cos %6 : vector<8x128xf32>
    %11 = arith.addf %9, %10 : vector<8x128xf32>
    %12 = arith.mulf %9, %10 : vector<8x128xf32>
    %13 = arith.addf %11, %12 : vector<8x128xf32>
    %cst = arith.constant 1.000000e+00 : f32
    %14 = vector.broadcast %cst : f32 to vector<8x128xf32>
    %15 = arith.subf %13, %14 : vector<8x128xf32>
    %cst_7 = arith.constant 5.000000e-01 : f32
    %16 = vector.broadcast %cst_7 : f32 to vector<8x128xf32>
    %17 = arith.mulf %15, %16 : vector<8x128xf32>
    %cst_8 = arith.constant 0.999989986 : f32
    %18 = vector.broadcast %cst_8 : f32 to vector<8x128xf32>
    %19 = arith.mulf %17, %18 : vector<8x128xf32>
    %20 = arith.mulf %19, %19 : vector<8x128xf32>
    %cst_9 = arith.constant 1.000000e+00 : f32
    %21 = vector.broadcast %cst_9 : f32 to vector<8x128xf32>
    %22 = arith.subf %21, %20 : vector<8x128xf32>
    %cst_10 = arith.constant 0.000000e+00 : f32
    %23 = vector.broadcast %cst_10 : f32 to vector<8x128xf32>
    %24 = arith.maximumf %22, %23 : vector<8x128xf32>
    %25 = math.sqrt %24 : vector<8x128xf32>
    %26 = math.atan2 %25, %19 : vector<8x128xf32>
    %27 = arith.mulf %8, %8 : vector<8x128xf32>
    %c1_i32 = arith.constant 1 : i32
    %28 = arith.muli %arg0, %c1_i32 : i32
    %29 = arith.addi %28, %arg1 : i32
    %c1024_i32 = arith.constant 1024 : i32
    %30 = arith.muli %29, %c1024_i32 : i32
    %c1024_i32_11 = arith.constant 1024 : i32
    %31 = arith.addi %30, %c1024_i32_11 : i32
    %c8_i32 = arith.constant 8 : i32
    %32 = arith.cmpi sgt, %31, %c8_i32 : i32
    %true = arith.constant true
    %33 = arith.xori %32, %true : i1
    %34 = arith.extui %33 : i1 to i32
    %c0_i32_12 = arith.constant 0 : i32
    %35 = arith.cmpi ne, %34, %c0_i32_12 : i32
    scf.if %35 {
      %38 = vector.shape_cast %26 : vector<8x128xf32> to vector<1x8x128xf32>
      %cst_14 = arith.constant dense<0.000000e+00> : vector<8x128xf32>
      %39 = vector.multi_reduction <add>, %38, %cst_14 [0] : vector<1x8x128xf32> to vector<8x128xf32>
      %40 = vector.shape_cast %27 : vector<8x128xf32> to vector<1x8x128xf32>
      %cst_15 = arith.constant dense<0.000000e+00> : vector<8x128xf32>
      %41 = vector.multi_reduction <add>, %40, %cst_15 [0] : vector<1x8x128xf32> to vector<8x128xf32>
      %c0_16 = arith.constant 0 : index
      %c0_17 = arith.constant 0 : index
      %c0_18 = arith.constant 0 : index
      %c0_19 = arith.constant 0 : index
      %42 = vector.load %arg3[%c0_16, %c0_17, %c0_18, %c0_19] : memref<1x2x8x128xf32, #tpu.memory_space<vmem>>, vector<1x1x8x128xf32>
      %43 = vector.shape_cast %42 : vector<1x1x8x128xf32> to vector<8x128xf32>
      %44 = arith.addf %43, %39 : vector<8x128xf32>
      %c0_20 = arith.constant 0 : index
      %c0_21 = arith.constant 0 : index
      %c0_22 = arith.constant 0 : index
      %c0_23 = arith.constant 0 : index
      %45 = vector.load %arg3[%c0_20, %c0_21, %c0_22, %c0_23] : memref<1x2x8x128xf32, #tpu.memory_space<vmem>>, vector<1x1x8x128xf32>
      %46 = vector.shape_cast %45 : vector<1x1x8x128xf32> to vector<8x128xf32>
      %47 = vector.shape_cast %44 : vector<8x128xf32> to vector<1x1x8x128xf32>
      tpu.vector_store %arg3[%c0_20, %c0_21, %c0_22, %c0_23], %47 {strides = array<i32>} : memref<1x2x8x128xf32, #tpu.memory_space<vmem>>, vector<1x1x8x128xf32>,
      %c0_24 = arith.constant 0 : index
      %c1_25 = arith.constant 1 : index
      %c0_26 = arith.constant 0 : index
      %c0_27 = arith.constant 0 : index
      %48 = vector.load %arg3[%c0_24, %c1_25, %c0_26, %c0_27] : memref<1x2x8x128xf32, #tpu.memory_space<vmem>>, vector<1x1x8x128xf32>
      %49 = vector.shape_cast %48 : vector<1x1x8x128xf32> to vector<8x128xf32>
      %50 = arith.addf %49, %41 : vector<8x128xf32>
      %c0_28 = arith.constant 0 : index
      %c1_29 = arith.constant 1 : index
      %c0_30 = arith.constant 0 : index
      %c0_31 = arith.constant 0 : index
      %51 = vector.load %arg3[%c0_28, %c1_29, %c0_30, %c0_31] : memref<1x2x8x128xf32, #tpu.memory_space<vmem>>, vector<1x1x8x128xf32>
      %52 = vector.shape_cast %51 : vector<1x1x8x128xf32> to vector<8x128xf32>
      %53 = vector.shape_cast %50 : vector<8x128xf32> to vector<1x1x8x128xf32>
      tpu.vector_store %arg3[%c0_28, %c1_29, %c0_30, %c0_31], %53 {strides = array<i32>} : memref<1x2x8x128xf32, #tpu.memory_space<vmem>>, vector<1x1x8x128xf32>,
    } else {
    }
    %36 = arith.extui %32 : i1 to i32
    %c0_i32_13 = arith.constant 0 : i32
    %37 = arith.cmpi ne, %36, %c0_i32_13 : i32
    scf.if %37 {
      %38 = tpu.iota {dimensions = array<i32: 0>} : vector<8x128xi32>
      %39 = tpu.iota {dimensions = array<i32: 1>} : vector<8x128xi32>
      %c128_i32 = arith.constant 128 : i32
      %40 = vector.broadcast %c128_i32 : i32 to vector<8x128xi32>
      %41 = arith.muli %38, %40 : vector<8x128xi32>
      %42 = vector.broadcast %30 : i32 to vector<8x128xi32>
      %43 = arith.addi %42, %41 : vector<8x128xi32>
      %44 = arith.addi %43, %39 : vector<8x128xi32>
      %c8_i32_14 = arith.constant 8 : i32
      %45 = vector.broadcast %c8_i32_14 : i32 to vector<8x128xi32>
      %46 = arith.cmpi slt, %44, %45 : vector<8x128xi32>
      %cst_15 = arith.constant 0.000000e+00 : f32
      %47 = vector.broadcast %cst_15 : f32 to vector<8x128xf32>
      %48 = arith.select %46, %26, %47 : vector<8x128xi1>, vector<8x128xf32>
      %cst_16 = arith.constant 0.000000e+00 : f32
      %49 = vector.broadcast %cst_16 : f32 to vector<8x128xf32>
      %50 = arith.select %46, %27, %49 : vector<8x128xi1>, vector<8x128xf32>
      %51 = vector.shape_cast %48 : vector<8x128xf32> to vector<1x8x128xf32>
      %cst_17 = arith.constant dense<0.000000e+00> : vector<8x128xf32>
      %52 = vector.multi_reduction <add>, %51, %cst_17 [0] : vector<1x8x128xf32> to vector<8x128xf32>
      %53 = vector.shape_cast %50 : vector<8x128xf32> to vector<1x8x128xf32>
      %cst_18 = arith.constant dense<0.000000e+00> : vector<8x128xf32>
      %54 = vector.multi_reduction <add>, %53, %cst_18 [0] : vector<1x8x128xf32> to vector<8x128xf32>
      %c0_19 = arith.constant 0 : index
      %c0_20 = arith.constant 0 : index
      %c0_21 = arith.constant 0 : index
      %c0_22 = arith.constant 0 : index
      %55 = vector.load %arg3[%c0_19, %c0_20, %c0_21, %c0_22] : memref<1x2x8x128xf32, #tpu.memory_space<vmem>>, vector<1x1x8x128xf32>
      %56 = vector.shape_cast %55 : vector<1x1x8x128xf32> to vector<8x128xf32>
      %57 = arith.addf %56, %52 : vector<8x128xf32>
      %c0_23 = arith.constant 0 : index
      %c0_24 = arith.constant 0 : index
      %c0_25 = arith.constant 0 : index
      %c0_26 = arith.constant 0 : index
      %58 = vector.load %arg3[%c0_23, %c0_24, %c0_25, %c0_26] : memref<1x2x8x128xf32, #tpu.memory_space<vmem>>, vector<1x1x8x128xf32>
      %59 = vector.shape_cast %58 : vector<1x1x8x128xf32> to vector<8x128xf32>
      %60 = vector.shape_cast %57 : vector<8x128xf32> to vector<1x1x8x128xf32>
      tpu.vector_store %arg3[%c0_23, %c0_24, %c0_25, %c0_26], %60 {strides = array<i32>} : memref<1x2x8x128xf32, #tpu.memory_space<vmem>>, vector<1x1x8x128xf32>,
      %c0_27 = arith.constant 0 : index
      %c1_28 = arith.constant 1 : index
      %c0_29 = arith.constant 0 : index
      %c0_30 = arith.constant 0 : index
      %61 = vector.load %arg3[%c0_27, %c1_28, %c0_29, %c0_30] : memref<1x2x8x128xf32, #tpu.memory_space<vmem>>, vector<1x1x8x128xf32>
      %62 = vector.shape_cast %61 : vector<1x1x8x128xf32> to vector<8x128xf32>
      %63 = arith.addf %62, %54 : vector<8x128xf32>
      %c0_31 = arith.constant 0 : index
      %c1_32 = arith.constant 1 : index
      %c0_33 = arith.constant 0 : index
      %c0_34 = arith.constant 0 : index
      %64 = vector.load %arg3[%c0_31, %c1_32, %c0_33, %c0_34] : memref<1x2x8x128xf32, #tpu.memory_space<vmem>>, vector<1x1x8x128xf32>
      %65 = vector.shape_cast %64 : vector<1x1x8x128xf32> to vector<8x128xf32>
      %66 = vector.shape_cast %63 : vector<8x128xf32> to vector<1x1x8x128xf32>
      tpu.vector_store %arg3[%c0_31, %c1_32, %c0_33, %c0_34], %66 {strides = array<i32>} : memref<1x2x8x128xf32, #tpu.memory_space<vmem>>, vector<1x1x8x128xf32>,
    } else {
    }
    return
  }
  func.func @transform_0(%arg0: i32, %arg1: i32) -> (i32, i32, i32) {
    %c1_i32 = arith.constant 1 : i32
    %0 = arith.muli %arg0, %c1_i32 : i32
    %1 = arith.addi %0, %arg1 : i32
    %c0_i32 = arith.constant 0 : i32
    %c0_i32_0 = arith.constant 0 : i32
    %c0_i32_1 = arith.constant 0 : i32
    return %c0_i32, %1, %c0_i32_0 : i32, i32, i32
  }
  func.func @transform_1(%arg0: i32, %arg1: i32) -> (i32, i32, i32, i32) {
    %c0_i32 = arith.constant 0 : i32
    %c0_i32_0 = arith.constant 0 : i32
    %c0_i32_1 = arith.constant 0 : i32
    %c0_i32_2 = arith.constant 0 : i32
    return %arg0, %c0_i32, %c0_i32_0, %c0_i32_1 : i32, i32, i32, i32
  }
}

</mosaic_0001>

<llo_original>
// kernel: tpu_custom_call.1
$region0: #{tpu_custom_call.1}
  #allocation0 [shape = 'u32[]', space=smem, size = 0x4, offset = 0x4, fixed_abs, tag = 'smem constant byte address 0x4 - core index']
  #allocation1 [shape = 'u32[144,128]{1,0:T(1,128)}', space=vmem, size = 0x12000, scoped, tag = 'internal scratch']
  %s0 = inlined_call_operand.hbm [shape: f32[3,8,128], index: 0, kind: input, shape index: {}]
  %s1 = inlined_call_operand.hbm [shape: f32[1,2,8,128], index: 1, kind: output, shape index: {}]
  %s2 = sld [smem:[#allocation0]]
  $region30: #{tpu_custom_call.1} parent=0
    _
  %s4 = ssub.s32 1, %s2
  %s5 = scalar_select 0, %s4, %s2
  $region1: #{tpu_custom_call.1} parent=0
    #allocation2 [shape = 'u8[12288]{0}', space=vmem, size = 0x3000, scoped, tag = 'input window, operand 0, single buffered']
    #allocation3 [shape = 's32[1]{0}', space=sflag, size = 0x4, scoped, tag = 'scoped memory for tpu_custom_call.1']
    #allocation4 [shape = 's32[1]{0}', space=sflag, size = 0x4, scoped, tag = 'scoped memory for tpu_custom_call.1']
    #allocation5 [shape = 'u8[8192]{0}', space=vmem, size = 0x2000, scoped, tag = 'output window, operand 0, single buffered']
    %6 = vsyncpa [#allocation3], 0
    %7 = vsyncpa [#allocation4], 0
    // Predicated region
    $region2: #{tpu_custom_call.1} parent=1 // pred_check
      _
    $region3: #{tpu_custom_call.1} parent=1 // pred_check_branch
      %9 = sbr.rel (0) target = $region5
    $region4: #{tpu_custom_call.1} parent=1 // pred_region
      %s10 = sadd.s32 0, 0
      %s12 = ssub.s32 384, 384
      %13 = vsyncadd [#allocation3], %s12
      %s14 = smul.addr %s10, 128
      %s15 = scalar_lea.hbm %s0, %s14
      %s16 = sshll.u32 [#allocation2], 4
      %s17 = int_to_ptr.vmem [resolvable:$true] %s16
      %22 = dma.hbm_to_vmem [thread:$0]  %s15, 384, %s17, [#allocation3], 128, 128, 8
    $region5: #{tpu_custom_call.1} parent=1 // pred_fallthru
      _
    // Predicated region
    $region6: #{tpu_custom_call.1} parent=1 // pred_check
      _
    $region7: #{tpu_custom_call.1} parent=1 // pred_check_branch
      %24 = sbr.rel (0) target = $region9
    $region8: #{tpu_custom_call.1} parent=1 // pred_region
      %25 = dma.done [#allocation3], 384
    $region9: #{tpu_custom_call.1} parent=1 // pred_fallthru
      _
    %s26 = sadd.s32 0, 0
    %p27 = scmp.eq.s32.totalorder 0, 0
    // Predicated region
    $region10: #{tpu_custom_call.1} parent=1 // pred_check
      %p28 = pneg %p27
    $region11: #{tpu_custom_call.1} parent=1 // pred_check_branch
      %30 = sbr.rel (%p28) target = $region13
    $region12: #{tpu_custom_call.1} parent=1 // pred_region
      %31 = vst [vmem:[#allocation5] sm:$0xff] 0.0
      %32 = vst [vmem:[#allocation5 + $0x8] sm:$0xff] 0.0
    $region13: #{tpu_custom_call.1} parent=1 // pred_fallthru
      _
    %v33 = vld [vmem:[#allocation2] sm:$0xff]
    %s34 = scalar_lea.vmem [#allocation2], 8
    %v35 = vld [vmem:[%s34] sm:$0xff]
    %s36 = scalar_lea.vmem [#allocation2], 16
    %v37 = vld [vmem:[%s36] sm:$0xff]
    %v38 = vand.u32 2147483647, %v33
    %vm39 = vcmp.le.f32.partialorder %v38, 0.7853982
    %vm40 = vcmp.lt.s32.totalorder %v33, 0
    %v41 = vand.u32 %v33, 2139095040
    %v42 = vshrl.u32 %v41, 23
    %v43 = vsub.s32 %v42, 127
    %v44 = vand.u32 2147483647, %v33
    %v45 = vand.u32 %v44, 8388607
    %v46 = vor.u32 %v45, 8388608
    %v47 = vsub.s32 0, %v46
    %v48 = vadd.s32 %v43, 1
    %vm49 = vcmp.gt.s32.totalorder %v48, 0
    %v50 = vsel %vm49, %v48, 0
    %v51 = vshrl.u32 %v50, 5
    %v52 = vand.u32 %v50, 31
    %v53 = vsub.s32 32, %v52
    %v54 = vshrl.u32 683565275, %v53
    %v55 = vshll.u32 683565275, %v52
    %v56 = vshrl.u32 2475754826, %v53
    %v57 = vor.u32 %v55, %v56
    %v58 = vshll.u32 2475754826, %v52
    %v59 = vshrl.u32 2131351028, %v53
    %v60 = vor.u32 %v58, %v59
    %v61 = vshll.u32 2131351028, %v52
    %v62 = vshrl.u32 2102212464, %v53
    %v63 = vor.u32 %v61, %v62
    %v64 = vshll.u32 2102212464, %v52
    %v65 = vshrl.u32 920167782, %v53
    %v66 = vor.u32 %v64, %v65
    %v67 = vshll.u32 920167782, %v52
    %v68 = vshrl.u32 1326507024, %v53
    %v69 = vor.u32 %v67, %v68
    %vm70 = vcmp.lt.s32.totalorder %v51, 1
    %vm71 = vcmp.lt.s32.totalorder %v51, 2
    %vm72 = vcmp.lt.s32.totalorder %v51, 3
    %vm73 = vcmp.lt.s32.totalorder %v51, 4
    %v74 = vsel %vm70, %v54, %v57
    %v75 = vsel %vm73, %v63, 2102212464
    %v76 = vsel %vm72, %v60, %v75
    %v77 = vsel %vm71, %v74, %v76
    %v78 = vsel %vm70, %v57, %v60
    %v79 = vsel %vm73, %v66, 920167782
    %v80 = vsel %vm72, %v63, %v79
    %v81 = vsel %vm71, %v78, %v80
    %v82 = vsel %vm70, %v60, %v63
    %v83 = vsel %vm73, %v69, 1326507024
    %v84 = vsel %vm72, %v66, %v83
    %v85 = vsel %vm71, %v82, %v84
    %v86 = vshll.u32 %v46, 8
    %v87 = vmul.u32.u64.compose %v86, %v85
    %v88 = vextract.low.u32 %v87
    %v89 = vextract.high.u32 %v87
    %v90 = vmul.u32.u64.compose %v86, %v81
    %v91 = vextract.low.u32 %v90
    %v92 = vextract.high.u32 %v90
    %v93 = vmul.u32 %v86, %v77
    %v94 = vadd.s32 %v89, %v91
    %vm95 = vc.u32 %v89, %v91
    %v96 = vadd.s32 %v92, 1
    %v97 = vsel %vm95, %v96, %v92
    %v98 = vadd.s32 %v93, %v97
    %v99 = vadd.s32 %v98, 536870912
    %v100 = vshrl.u32 %v99, 30
    %v101 = vshll.u32 %v100, 30
    %v102 = vsub.s32 %v98, %v101
    %vm103 = vcmp.lt.s32.totalorder %v102, 0
    %v104 = vsub.s32 0, %v102
    %v105 = vsel %vm103, %v104, %v102
    %v106 = vclz %v105
    %v107 = vsub.s32 %v106, 2
    %vm108 = vcmp.gt.s32.totalorder 0, %v107
    %v109 = vsel %vm108, 0, %v107
    %v110 = vsub.s32 32, %v109
    %v111 = vshll.u32 %v102, %v109
    %v112 = vshrl.u32 %v94, %v110
    %v113 = vor.u32 %v111, %v112
    %v114 = vsub.s32 4294967266, %v109
    %v115 = vadd.s32 %v114, 127
    %v116 = vshll.u32 %v115, 23
    %v117 = vor.u32 4788187, %v116
    %v118 = vand.u32 2147483647, %v117
    %v120 = vcvt.s32.f32 %v113
    %v121 = vmul.f32 %v120, %v118
    %v122 = vxor.u32 %v121, 2147483648
    %v123 = vsel %vm40, %v122, %v121
    %v124 = vsub.s32 4, %v100
    %v125 = vsel %vm40, %v124, %v100
    %v126 = vsel %vm39, %v33, %v123
    %v127 = vsel %vm39, 0, %v125
    %v128 = vcosq.f32.pop %v126
    %v129 = vsinq.f32.pop %v126
    %vm130 = vweird.f32 %v33
    %v131 = vand.u32 %v127, 3
    %vm132 = vcmp.lt.s32.totalorder %v131, 2
    %vm133 = vcmp.eq.s32.totalorder %v131, 0
    %v134 = vxor.u32 %v129, 2147483648
    %v135 = vsel %vm133, %v128, %v134
    %vm136 = vcmp.eq.s32.totalorder %v131, 2
    %v137 = vxor.u32 %v128, 2147483648
    %v138 = vsel %vm136, %v137, %v129
    %v139 = vsel %vm132, %v135, %v138
    %v140 = vsel %vm130, nan, %v139
    %v141 = vand.u32 2147483647, %v35
    %vm142 = vcmp.le.f32.partialorder %v141, 0.7853982
    %vm143 = vcmp.lt.s32.totalorder %v35, 0
    %v144 = vand.u32 %v35, 2139095040
    %v145 = vshrl.u32 %v144, 23
    %v146 = vsub.s32 %v145, 127
    %v147 = vand.u32 2147483647, %v35
    %v148 = vand.u32 %v147, 8388607
    %v149 = vor.u32 %v148, 8388608
    %v150 = vsub.s32 0, %v149
    %v151 = vadd.s32 %v146, 1
    %vm152 = vcmp.gt.s32.totalorder %v151, 0
    %v153 = vsel %vm152, %v151, 0
    %v154 = vshrl.u32 %v153, 5
    %v155 = vand.u32 %v153, 31
    %v156 = vsub.s32 32, %v155
    %v157 = vshrl.u32 683565275, %v156
    %v158 = vshll.u32 683565275, %v155
    %v159 = vshrl.u32 2475754826, %v156
    %v160 = vor.u32 %v158, %v159
    %v161 = vshll.u32 2475754826, %v155
    %v162 = vshrl.u32 2131351028, %v156
    %v163 = vor.u32 %v161, %v162
    %v164 = vshll.u32 2131351028, %v155
    %v165 = vshrl.u32 2102212464, %v156
    %v166 = vor.u32 %v164, %v165
    %v167 = vshll.u32 2102212464, %v155
    %v168 = vshrl.u32 920167782, %v156
    %v169 = vor.u32 %v167, %v168
    %v170 = vshll.u32 920167782, %v155
    %v171 = vshrl.u32 1326507024, %v156
    %v172 = vor.u32 %v170, %v171
    %vm173 = vcmp.lt.s32.totalorder %v154, 1
    %vm174 = vcmp.lt.s32.totalorder %v154, 2
    %vm175 = vcmp.lt.s32.totalorder %v154, 3
    %vm176 = vcmp.lt.s32.totalorder %v154, 4
    %v177 = vsel %vm173, %v157, %v160
    %v178 = vsel %vm176, %v166, 2102212464
    %v179 = vsel %vm175, %v163, %v178
    %v180 = vsel %vm174, %v177, %v179
    %v181 = vsel %vm173, %v160, %v163
    %v182 = vsel %vm176, %v169, 920167782
    %v183 = vsel %vm175, %v166, %v182
    %v184 = vsel %vm174, %v181, %v183
    %v185 = vsel %vm173, %v163, %v166
    %v186 = vsel %vm176, %v172, 1326507024
    %v187 = vsel %vm175, %v169, %v186
    %v188 = vsel %vm174, %v185, %v187
    %v189 = vshll.u32 %v149, 8
    %v190 = vmul.u32.u64.compose %v189, %v188
    %v191 = vextract.low.u32 %v190
    %v192 = vextract.high.u32 %v190
    %v193 = vmul.u32.u64.compose %v189, %v184
    %v194 = vextract.low.u32 %v193
    %v195 = vextract.high.u32 %v193
    %v196 = vmul.u32 %v189, %v180
    %v197 = vadd.s32 %v192, %v194
    %vm198 = vc.u32 %v192, %v194
    %v199 = vadd.s32 %v195, 1
    %v200 = vsel %vm198, %v199, %v195
    %v201 = vadd.s32 %v196, %v200
    %v202 = vadd.s32 %v201, 536870912
    %v203 = vshrl.u32 %v202, 30
    %v204 = vshll.u32 %v203, 30
    %v205 = vsub.s32 %v201, %v204
    %vm206 = vcmp.lt.s32.totalorder %v205, 0
    %v207 = vsub.s32 0, %v205
    %v208 = vsel %vm206, %v207, %v205
    %v209 = vclz %v208
    %v210 = vsub.s32 %v209, 2
    %vm211 = vcmp.gt.s32.totalorder 0, %v210
    %v212 = vsel %vm211, 0, %v210
    %v213 = vsub.s32 32, %v212
    %v214 = vshll.u32 %v205, %v212
    %v215 = vshrl.u32 %v197, %v213
    %v216 = vor.u32 %v214, %v215
    %v217 = vsub.s32 4294967266, %v212
    %v218 = vadd.s32 %v217, 127
    %v219 = vshll.u32 %v218, 23
    %v220 = vor.u32 4788187, %v219
    %v221 = vand.u32 2147483647, %v220
    %v223 = vcvt.s32.f32 %v216
    %v224 = vmul.f32 %v223, %v221
    %v225 = vxor.u32 %v224, 2147483648
    %v226 = vsel %vm143, %v225, %v224
    %v227 = vsub.s32 4, %v203
    %v228 = vsel %vm143, %v227, %v203
    %v229 = vsel %vm142, %v35, %v226
    %v230 = vsel %vm142, 0, %v228
    %v231 = vcosq.f32.pop %v229
    %v232 = vsinq.f32.pop %v229
    %vm233 = vweird.f32 %v35
    %v234 = vand.u32 %v230, 3
    %vm235 = vcmp.lt.s32.totalorder %v234, 2
    %vm236 = vcmp.eq.s32.totalorder %v234, 0
    %v237 = vxor.u32 %v232, 2147483648
    %v238 = vsel %vm236, %v231, %v237
    %vm239 = vcmp.eq.s32.totalorder %v234, 2
    %v240 = vxor.u32 %v231, 2147483648
    %v241 = vsel %vm239, %v240, %v232
    %v242 = vsel %vm235, %v238, %v241
    %v243 = vsel %vm233, nan, %v242
    %v244 = vadd.f32 %v140, %v243
    %v245 = vmul.f32 %v140, %v243
    %v246 = vadd.f32 %v244, %v245
    %v247 = vsub.f32 %v246, 1.0
    %v248 = vmul.f32 %v247, 0.5
    %v249 = vmul.f32 %v248, 0.99999
    %v250 = vmul.f32 %v249, %v249
    %v251 = vsub.f32 1.0, %v250
    %v252 = vmax.f32 %v251, 0.0
    %v253 = vrsqrt.pop %v252
    %v254 = vmul.f32 %v252, %v253
    %vm255 = vcmp.eq.f32.partialorder %v252, inf
    %v256 = vsel %vm255, %v252, %v254
    %vm257 = vcmp.eq.f32.partialorder %v252, 0.0
    %v258 = vand.u32 %v252, 2147483648
    %v259 = vsel %vm257, %v258, %v256
    %v260 = vand.u32 2147483647, %v249
    %v261 = vand.u32 2147483647, %v259
    %v262 = vmin.f32 %v260, %v261
    %v263 = vmax.f32 %v260, %v261
    %v264 = vrcp.pop %v263
    %v265 = vmul.f32 %v262, %v264
    %v266 = vmul.f32 %v265, %v265
    %v267 = vmul.f32 0.002785687, %v266
    %v268 = vadd.f32 %v267, -0.015866
    %v269 = vmul.f32 %v268, %v266
    %v270 = vadd.f32 %v269, 0.04247222
    %v271 = vmul.f32 %v270, %v266
    %v272 = vadd.f32 %v271, -0.074975304
    %v273 = vmul.f32 %v272, %v266
    %v274 = vadd.f32 %v273, 0.1064488
    %v275 = vmul.f32 %v274, %v266
    %v276 = vadd.f32 %v275, -0.14207031
    %v277 = vmul.f32 %v276, %v266
    %v278 = vadd.f32 %v277, 0.19993454
    %v279 = vmul.f32 %v278, %v266
    %v280 = vadd.f32 %v279, -0.33333147
    %v281 = vmul.f32 %v280, %v266
    %v282 = vmul.f32 %v281, %v265
    %v283 = vadd.f32 %v282, %v265
    %vm284 = vcmp.gt.f32.partialorder %v261, %v260
    %v285 = vsub.f32 1.5707964, %v283
    %v286 = vsel %vm284, %v285, %v283
    %vm287 = vcmp.lt.f32.partialorder %v249, 0.0
    %v288 = vsub.f32 3.1415927, %v286
    %v289 = vsel %vm287, %v288, %v286
    %vm290 = vcmp.lt.s32.totalorder %v249, 0
    %v291 = vsel %vm290, 3.1415927, 0.0
    %vm292 = vcmp.eq.f32.partialorder %v259, 0.0
    %v293 = vsel %vm292, %v291, %v289
    %vm294 = vcmp.ne.f32.partialorder %v249, %v249
    %vm295 = vcmp.ne.f32.partialorder %v259, %v259
    %vm296 = vmor %vm294, %vm295
    %v297 = vsel %vm296, nan, %v293
    %vm298 = vcmp.lt.f32.partialorder %v249, 0.0
    %v299 = vsel %vm298, 2.3561945, 0.7853982
    %vm300 = vcmp.eq.s32.totalorder %v260, inf
    %vm301 = vcmp.eq.s32.totalorder %v261, inf
    %vm302 = vmand %vm300, %vm301
    %v303 = vsel %vm302, %v299, %v297
    %v304 = vand.u32 2147483647, %v303
    %v305 = vand.u32 %v259, 2147483648
    %v306 = vor.u32 %v304, %v305
    %v307 = vmul.f32 %v37, %v37
    %s308 = sadd.s32 0, 0
    %s309 = smul.u32 %s308, 1024
    %s310 = sadd.s32 %s309, 1024
    %p311 = scmp.gt.s32.totalorder %s310, 8
    %p312 = scmp.le.s32.totalorder %s310, 8
    // Predicated region
    $region14: #{tpu_custom_call.1} parent=1 // pred_check
      %p313 = pneg %p312
    $region15: #{tpu_custom_call.1} parent=1 // pred_check_branch
      %315 = sbr.rel (%p313) target = $region17
    $region16: #{tpu_custom_call.1} parent=1 // pred_region
      %v316 = vadd.f32 %v306, 0.0
      %v317 = vadd.f32 %v307, 0.0
      %v318 = vld [vmem:[#allocation5] sm:$0xff]
      %v319 = vadd.f32 %v318, %v316
      %320 = vst [vmem:[#allocation5] sm:$0xff] %v319
      %s321 = scalar_lea.vmem [#allocation5], 8
      %v322 = vld [vmem:[%s321] sm:$0xff]
      %v323 = vadd.f32 %v322, %v317
      %324 = vst [vmem:[%s321] sm:$0xff] %v323
    $region17: #{tpu_custom_call.1} parent=1 // pred_fallthru
      _
    // Predicated region
    $region18: #{tpu_custom_call.1} parent=1 // pred_check
      %p325 = pneg %p311
    $region19: #{tpu_custom_call.1} parent=1 // pred_check_branch
      %327 = sbr.rel (%p325) target = $region21
    $region20: #{tpu_custom_call.1} parent=1 // pred_region
      %v328 = vlaneseq
      %v329 = vshrl.u32 %v328, 7
      %v330 = vlaneseq
      %v331 = vand.u32 %v330, 127
      %v332 = vmul.u32 %v329, 128
      %v333 = vstv %s309
      %v334 = vadd.s32 %v333, %v332
      %v335 = vadd.s32 %v334, %v331
      %vm336 = vcmp.lt.s32.totalorder %v335, 8
      %v337 = vsel %vm336, %v306, 0.0
      %v338 = vsel %vm336, %v307, 0.0
      %v339 = vadd.f32 %v337, 0.0
      %v340 = vadd.f32 %v338, 0.0
      %v341 = vld [vmem:[#allocation5] sm:$0xff]
      %v342 = vadd.f32 %v341, %v339
      %343 = vst [vmem:[#allocation5] sm:$0xff] %v342
      %s344 = scalar_lea.vmem [#allocation5], 8
      %v345 = vld [vmem:[%s344] sm:$0xff]
      %v346 = vadd.f32 %v345, %v340
      %347 = vst [vmem:[%s344] sm:$0xff] %v346
    $region21: #{tpu_custom_call.1} parent=1 // pred_fallthru
      _
    // Predicated region
    $region22: #{tpu_custom_call.1} parent=1 // pred_check
      _
    $region23: #{tpu_custom_call.1} parent=1 // pred_check_branch
      %349 = sbr.rel (0) target = $region25
    $region24: #{tpu_custom_call.1} parent=1 // pred_region
      %s351 = ssub.s32 256, 256
      %352 = vsyncadd [#allocation4], %s351
      %s353 = sshll.u32 [#allocation5], 4
      %s354 = int_to_ptr.vmem [resolvable:$true] %s353
      %359 = dma.vmem_to_hbm [thread:$0]  %s354, 256, %s1, [#allocation4], 128, 128, 8
    $region25: #{tpu_custom_call.1} parent=1 // pred_fallthru
      _
    // Predicated region
    $region26: #{tpu_custom_call.1} parent=1 // pred_check
      _
    $region27: #{tpu_custom_call.1} parent=1 // pred_check_branch
      %361 = sbr.rel (0) target = $region29
    $region28: #{tpu_custom_call.1} parent=1 // pred_region
      %362 = dma.done [#allocation4], 256
    $region29: #{tpu_custom_call.1} parent=1 // pred_fallthru
      _
    %363 = vsyncpa [#allocation3], 1
    %364 = vsyncpa [#allocation4], 1

</llo_original>
